<compile_context>
chip_gen: v5e
topology: v5e:2x2
jax: 0.10.0
libtpu: 0.0.40
codegen_flags: <defaults>
</compile_context>

<pallas_src>
import functools

import jax
import jax.numpy as jnp
from jax import lax
from jax.experimental import pallas as pl
from jax.experimental.pallas import tpu as pltpu


def _mlp_kernel(x_ref, w1_ref, b1_ref, w2_ref, b2_ref,
                w3_ref, b3_ref, w4_ref, b4_ref, o_ref, *, sub):
    """One grid step: x tile [bm, input_dim] -> out row [1, bm] (batch on the 128-lane axis)."""
    cd = w1_ref.dtype                       # compute dtype for MXU inputs (f32 or bf16)
    bm = o_ref.shape[1]
    n_sub = bm // sub

    # Tiny resident operands: load once per grid step, reuse for every sub-block.
    w1 = w1_ref[...]
    w2 = w2_ref[...]
    w3 = w3_ref[...]
    b1 = b1_ref[...]
    b2 = b2_ref[...]
    b3 = b3_ref[...]
    w4 = w4_ref[...]                        # [n3, 1] column, f32
    b4 = b4_ref[...]                        # [1, 1], f32

    def body(s, carry):
        col = pl.multiple_of(s * sub, 128)
        # Cast x to the MXU dtype *inside* the kernel (VPU, free) — no wrapper astype pass.
        x = x_ref[pl.ds(col, sub), :].astype(cd)              # [sub, input_dim]

        # fc1 + ReLU, feature-major: W1 [n1, in] contracted with x [sub, in] -> h [n1, sub].
        # "ok,bk->ob" contracts both lane axes; the x relayout lands on the otherwise-idle XLU.
        h = jnp.einsum("ok,bk->ob", w1, x, preferred_element_type=jnp.float32)
        h = jnp.maximum(h + b1, 0.0)        # dropout == identity in eval mode

        # fc2 + ReLU: W2 [n2, n1] @ h [n1, sub] -> [n2, sub]
        h = jnp.dot(w2, h.astype(cd), preferred_element_type=jnp.float32)
        h = jnp.maximum(h + b2, 0.0)

        # fc3 + ReLU: W3 [n3, n2] @ h [n2, sub] -> [n3, sub]
        h = jnp.dot(w3, h.astype(cd), preferred_element_type=jnp.float32)
        h = jnp.maximum(h + b3, 0.0)

        # fc4 (out_features == 1): VPU multiply + sublane reduce (avoids an N=1 MXU matmul),
        # producing a lane-dense [1, sub] slab.
        out = jnp.sum(h * w4, axis=0, keepdims=True) + b4
        o_ref[:, pl.ds(col, sub)] = out.astype(o_ref.dtype)
        return carry

    lax.fori_loop(0, n_sub, body, None, unroll=True)


def _round_up(x, m):
    return ((x + m - 1) // m) * m


def net3_forward(x, params, *, block_batch=2048, sub_block=512,
                 compute_dtype=jnp.float32):
    """Inference-mode Net3 forward.

    x: [B, input_dim]. params: dict name -> (W [out, in], b [out, 1]) (torch-native shapes).
    block_batch: DMA batch tile (multiple of 128; sweep 2048-16384, larger on v7x).
    sub_block:   in-kernel compute sub-tile (multiple of 128) bounding vreg pressure.
    compute_dtype: jnp.float32 (exact torch numerics) or jnp.bfloat16 (recommended on
    v5e/v6e/v7x: bf16 MXU operands, f32 accumulation and f32 bias/ReLU).
    """
    B, input_dim = x.shape
    assert block_batch % 128 == 0, "block_batch must be a multiple of 128 (lane axis)"
    assert sub_block % 128 == 0, "sub_block must be a multiple of 128 (lane axis)"

    w1, b1 = params["fc1"]
    w2, b2 = params["fc2"]
    w3, b3 = params["fc3"]
    w4, b4 = params["fc4"]
    n1, n2, n3 = w1.shape[0], w2.shape[0], w3.shape[0]

    # Batch tile: shrink for small batches (don't compute mostly padding) but stay large
    # otherwise. No jnp.pad: grid uses cdiv and Pallas masks the ragged tail block.
    bm = min(block_batch, _round_up(B, 128))
    sub = min(sub_block, bm)
    if bm % sub != 0:
        sub = 128                           # bm is always a multiple of 128
    num_blocks = pl.cdiv(B, bm)

    cw = lambda w: w.astype(compute_dtype)  # weights are ~20 KB total: casting is negligible
    w4_col = w4.reshape(n3, 1)              # torch [1, n3] -> [n3, 1] column, stays f32 (VPU)

    def resident(arr):
        # Whole (tiny) array stays resident in VMEM for every grid step.
        return pl.BlockSpec(arr.shape, lambda i: (0,) * arr.ndim)

    flops = 2 * B * (input_dim * n1 + n1 * n2 + n2 * n3 + n3)
    bytes_accessed = (B * input_dim * x.dtype.itemsize + B * 4
                      + sum(int(a.size) * 4 for a in (w1, b1, w2, b2, w3, b3, w4, b4)))

    out = pl.pallas_call(
        functools.partial(_mlp_kernel, sub=sub),
        out_shape=jax.ShapeDtypeStruct((1, B), jnp.float32),
        grid_spec=pltpu.PrefetchScalarGridSpec(
            num_scalar_prefetch=0,
            grid=(num_blocks,),
            in_specs=[
                pl.BlockSpec((bm, input_dim), lambda i: (i, 0)),   # x stream (batch-major HBM)
                resident(w1), resident(b1),
                resident(w2), resident(b2),
                resident(w3), resident(b3),
                resident(w4_col), resident(b4),
            ],
            # Lane-dense output: one [1, bm] row per grid step.
            out_specs=pl.BlockSpec((1, bm), lambda i: (0, i)),
        ),
        compiler_params=pltpu.CompilerParams(
            dimension_semantics=("parallel",),   # lets v7x shard grid steps across its 2 TCs
        ),
        cost_estimate=pl.CostEstimate(flops=flops, transcendentals=0,
                                      bytes_accessed=bytes_accessed),
    )(x, cw(w1), b1, cw(w2), b2, cw(w3), b3, w4_col, b4)

    return out.reshape(B, 1)


def init_params(key, input_dim, n1, n2, n3):
    """Deterministic init matching nn.Linear shapes.
    Weights are torch-native [out_features, in_features]; biases stored as [out, 1]."""
    dims = [(input_dim, n1), (n1, n2), (n2, n3), (n3, 1)]
    names = ["fc1", "fc2", "fc3", "fc4"]
    params = {}
    for name, (din, dout) in zip(names, dims):
        key, kw, kb = jax.random.split(key, 3)
        bound = float(din) ** -0.5          # torch default uniform bound
        w = jax.random.uniform(kw, (dout, din), jnp.float32, -bound, bound)
        b = jax.random.uniform(kb, (dout, 1), jnp.float32, -bound, bound)
        params[name] = (w, b)
    return params


def net3_reference(x, params, compute_dtype=jnp.float32):
    """Pure-JAX reference mirroring the kernel's casting points (identity casts for f32)."""
    cd = compute_dtype
    h = x.astype(cd)
    h_f32 = None
    for name in ("fc1", "fc2", "fc3"):
        w, b = params[name]
        pre = jnp.dot(h, w.astype(cd).T, preferred_element_type=jnp.float32) + b.reshape(1, -1)
        h_f32 = jnp.maximum(pre, 0.0)
        h = h_f32.astype(cd)
    w4, b4 = params["fc4"]
    return jnp.dot(h_f32, w4.T) + b4.reshape(1, -1)   # fc4 stays f32 in the kernel (VPU)


if __name__ == "__main__":
    key = jax.random.PRNGKey(0)
    input_dim, n1, n2, n3 = 32, 64, 32, 16

    key, kx = jax.random.split(key)
    params = init_params(key, input_dim, n1, n2, n3)

    # Small batch, f32 path (tile auto-shrinks to 128 lanes; ragged tail is masked, no pad copy).
    x = jax.random.normal(kx, (8, input_dim), jnp.float32)
    out = jax.block_until_ready(net3_forward(x, params))
    ref = net3_reference(x, params)
    assert out.shape == (8, 1), out.shape
    assert jnp.allclose(out, ref, atol=1e-4, rtol=1e-4), "f32 mismatch vs reference"

    # bf16 MXU path (v5e/v6e/v7x) — compared against a reference casting at the same points.
    out_bf16 = jax.block_until_ready(
        net3_forward(x, params, compute_dtype=jnp.bfloat16))
    ref_bf16 = net3_reference(x, params, compute_dtype=jnp.bfloat16)
    assert jnp.allclose(out_bf16, ref_bf16, atol=1e-2, rtol=1e-2), "bf16 mismatch vs reference"

    # Ragged batch + multi-block grid + in-kernel sub-block loop (exercises cdiv masking).
    key, kx2 = jax.random.split(key)
    x2 = jax.random.normal(kx2, (300, input_dim), jnp.float32)
    out2 = jax.block_until_ready(
        net3_forward(x2, params, block_batch=256, sub_block=128))
    ref2 = net3_reference(x2, params)
    assert out2.shape == (300, 1), out2.shape
    assert jnp.allclose(out2, ref2, atol=1e-4, rtol=1e-4), "ragged-batch mismatch vs reference"

    print("KERNEL_OK")
</pallas_src>

<mosaic_0001>
module attributes {stable_mosaic.version = 11 : i64} {
  func.func @_mlp_kernel(%arg0: i32, %arg1: memref<128x32xf32, #tpu.memory_space<vmem>>, %arg2: memref<64x32xf32, #tpu.memory_space<vmem>>, %arg3: memref<64x1xf32, #tpu.memory_space<vmem>>, %arg4: memref<32x64xf32, #tpu.memory_space<vmem>>, %arg5: memref<32x1xf32, #tpu.memory_space<vmem>>, %arg6: memref<16x32xf32, #tpu.memory_space<vmem>>, %arg7: memref<16x1xf32, #tpu.memory_space<vmem>>, %arg8: memref<16x1xf32, #tpu.memory_space<vmem>>, %arg9: memref<1x1xf32, #tpu.memory_space<vmem>>, %arg10: memref<1x128xf32, #tpu.memory_space<vmem>>) attributes {dimension_semantics = [#tpu.dimension_semantics<parallel>], iteration_bounds = array<i64: 1>, scalar_prefetch = 0 : i64, scratch_operands = 0 : i64, tpu.core_type = #tpu.core_type<tc>, window_params = [{transform_indices = @transform_0, window_bounds = array<i64: 128, 32>}, {pipeline_mode = #tpu.pipeline_mode<synchronous>, transform_indices = @transform_1, window_bounds = array<i64: 64, 32>}, {pipeline_mode = #tpu.pipeline_mode<synchronous>, transform_indices = @transform_2, window_bounds = array<i64: 64, 1>}, {pipeline_mode = #tpu.pipeline_mode<synchronous>, transform_indices = @transform_3, window_bounds = array<i64: 32, 64>}, {pipeline_mode = #tpu.pipeline_mode<synchronous>, transform_indices = @transform_4, window_bounds = array<i64: 32, 1>}, {pipeline_mode = #tpu.pipeline_mode<synchronous>, transform_indices = @transform_5, window_bounds = array<i64: 16, 32>}, {pipeline_mode = #tpu.pipeline_mode<synchronous>, transform_indices = @transform_6, window_bounds = array<i64: 16, 1>}, {pipeline_mode = #tpu.pipeline_mode<synchronous>, transform_indices = @transform_7, window_bounds = array<i64: 16, 1>}, {pipeline_mode = #tpu.pipeline_mode<synchronous>, transform_indices = @transform_8, window_bounds = array<i64: 1, 1>}, {transform_indices = @transform_9, window_bounds = array<i64: 1, 128>}]} {
    %c0 = arith.constant 0 : index
    %c0_0 = arith.constant 0 : index
    %0 = vector.load %arg2[%c0, %c0_0] : memref<64x32xf32, #tpu.memory_space<vmem>>, vector<64x32xf32>
    %c0_1 = arith.constant 0 : index
    %c0_2 = arith.constant 0 : index
    %1 = vector.load %arg4[%c0_1, %c0_2] : memref<32x64xf32, #tpu.memory_space<vmem>>, vector<32x64xf32>
    %c0_3 = arith.constant 0 : index
    %c0_4 = arith.constant 0 : index
    %2 = vector.load %arg6[%c0_3, %c0_4] : memref<16x32xf32, #tpu.memory_space<vmem>>, vector<16x32xf32>
    %c0_5 = arith.constant 0 : index
    %c0_6 = arith.constant 0 : index
    %3 = vector.load %arg3[%c0_5, %c0_6] : memref<64x1xf32, #tpu.memory_space<vmem>>, vector<64x1xf32>
    %c0_7 = arith.constant 0 : index
    %c0_8 = arith.constant 0 : index
    %4 = vector.load %arg5[%c0_7, %c0_8] : memref<32x1xf32, #tpu.memory_space<vmem>>, vector<32x1xf32>
    %c0_9 = arith.constant 0 : index
    %c0_10 = arith.constant 0 : index
    %5 = vector.load %arg7[%c0_9, %c0_10] : memref<16x1xf32, #tpu.memory_space<vmem>>, vector<16x1xf32>
    %c0_11 = arith.constant 0 : index
    %c0_12 = arith.constant 0 : index
    %6 = vector.load %arg8[%c0_11, %c0_12] : memref<16x1xf32, #tpu.memory_space<vmem>>, vector<16x1xf32>
    %c0_13 = arith.constant 0 : index
    %c0_14 = arith.constant 0 : index
    %7 = vector.load %arg9[%c0_13, %c0_14] : memref<1x1xf32, #tpu.memory_space<vmem>>, vector<1x1xf32>
    %c0_i32 = arith.constant 0 : i32
    %c128_i32 = arith.constant 128 : i32
    %8 = arith.muli %c0_i32, %c128_i32 : i32
    %9 = tpu.assume_multiple %8, 128 : i32
    %10 = arith.index_cast %9 : i32 to index
    %c0_15 = arith.constant 0 : index
    %11 = vector.load %arg1[%10, %c0_15] : memref<128x32xf32, #tpu.memory_space<vmem>>, vector<128x32xf32>
    "tpu.trace_start"() <{level = 10 : i32, message = "ok,bk->ob"}> : () -> ()
    %cst = arith.constant dense<0.000000e+00> : vector<64x128xf32>
    %12 = tpu.matmul %0, %11, %cst {dimension_numbers = #tpu.dot_dimension_numbers<[1], [1], [0], [0], [0, 0, 1, 0], [], []>} : vector<64x32xf32>, vector<128x32xf32>, vector<64x128xf32> -> vector<64x128xf32>
    "tpu.trace_stop"() : () -> ()
    %13 = vector.broadcast %3 : vector<64x1xf32> to vector<64x128xf32>
    %14 = arith.addf %12, %13 : vector<64x128xf32>
    %cst_16 = arith.constant 0.000000e+00 : f32
    %15 = vector.broadcast %cst_16 : f32 to vector<64x128xf32>
    %16 = arith.maximumf %14, %15 : vector<64x128xf32>
    %cst_17 = arith.constant dense<0.000000e+00> : vector<32x128xf32>
    %17 = tpu.matmul %1, %16, %cst_17 {dimension_numbers = #tpu.dot_dimension_numbers<[1], [0], [0], [1], [0, 0, 1, 1], [], []>} : vector<32x64xf32>, vector<64x128xf32>, vector<32x128xf32> -> vector<32x128xf32>
    %18 = vector.broadcast %4 : vector<32x1xf32> to vector<32x128xf32>
    %19 = arith.addf %17, %18 : vector<32x128xf32>
    %cst_18 = arith.constant 0.000000e+00 : f32
    %20 = vector.broadcast %cst_18 : f32 to vector<32x128xf32>
    %21 = arith.maximumf %19, %20 : vector<32x128xf32>
    %cst_19 = arith.constant dense<0.000000e+00> : vector<16x128xf32>
    %22 = tpu.matmul %2, %21, %cst_19 {dimension_numbers = #tpu.dot_dimension_numbers<[1], [0], [0], [1], [0, 0, 1, 1], [], []>} : vector<16x32xf32>, vector<32x128xf32>, vector<16x128xf32> -> vector<16x128xf32>
    %23 = vector.broadcast %5 : vector<16x1xf32> to vector<16x128xf32>
    %24 = arith.addf %22, %23 : vector<16x128xf32>
    %cst_20 = arith.constant 0.000000e+00 : f32
    %25 = vector.broadcast %cst_20 : f32 to vector<16x128xf32>
    %26 = arith.maximumf %24, %25 : vector<16x128xf32>
    %27 = vector.broadcast %6 : vector<16x1xf32> to vector<16x128xf32>
    %28 = arith.mulf %26, %27 : vector<16x128xf32>
    %cst_21 = arith.constant dense<0.000000e+00> : vector<128xf32>
    %29 = vector.multi_reduction <add>, %28, %cst_21 [0] : vector<16x128xf32> to vector<128xf32>
    %30 = vector.shape_cast %29 : vector<128xf32> to vector<1x128xf32>
    %31 = vector.broadcast %7 : vector<1x1xf32> to vector<1x128xf32>
    %32 = arith.addf %30, %31 : vector<1x128xf32>
    %c0_22 = arith.constant 0 : index
    %33 = arith.index_cast %9 : i32 to index
    %34 = vector.load %arg10[%c0_22, %33] : memref<1x128xf32, #tpu.memory_space<vmem>>, vector<1x128xf32>
    tpu.vector_store %arg10[%c0_22, %33], %32 {strides = array<i32>} : memref<1x128xf32, #tpu.memory_space<vmem>>, vector<1x128xf32>,
    %c1_i32 = arith.constant 1 : i32
    return
  }
  func.func @transform_0(%arg0: i32) -> (i32, i32) {
    %c0_i32 = arith.constant 0 : i32
    %c0_i32_0 = arith.constant 0 : i32
    return %arg0, %c0_i32 : i32, i32
  }
  func.func @transform_1(%arg0: i32) -> (i32, i32) {
    %c0_i32 = arith.constant 0 : i32
    %c0_i32_0 = arith.constant 0 : i32
    %c0_i32_1 = arith.constant 0 : i32
    return %c0_i32, %c0_i32_0 : i32, i32
  }
  func.func @transform_2(%arg0: i32) -> (i32, i32) {
    %c0_i32 = arith.constant 0 : i32
    %c0_i32_0 = arith.constant 0 : i32
    %c0_i32_1 = arith.constant 0 : i32
    return %c0_i32, %c0_i32_0 : i32, i32
  }
  func.func @transform_3(%arg0: i32) -> (i32, i32) {
    %c0_i32 = arith.constant 0 : i32
    %c0_i32_0 = arith.constant 0 : i32
    %c0_i32_1 = arith.constant 0 : i32
    return %c0_i32, %c0_i32_0 : i32, i32
  }
  func.func @transform_4(%arg0: i32) -> (i32, i32) {
    %c0_i32 = arith.constant 0 : i32
    %c0_i32_0 = arith.constant 0 : i32
    %c0_i32_1 = arith.constant 0 : i32
    return %c0_i32, %c0_i32_0 : i32, i32
  }
  func.func @transform_5(%arg0: i32) -> (i32, i32) {
    %c0_i32 = arith.constant 0 : i32
    %c0_i32_0 = arith.constant 0 : i32
    %c0_i32_1 = arith.constant 0 : i32
    return %c0_i32, %c0_i32_0 : i32, i32
  }
  func.func @transform_6(%arg0: i32) -> (i32, i32) {
    %c0_i32 = arith.constant 0 : i32
    %c0_i32_0 = arith.constant 0 : i32
    %c0_i32_1 = arith.constant 0 : i32
    return %c0_i32, %c0_i32_0 : i32, i32
  }
  func.func @transform_7(%arg0: i32) -> (i32, i32) {
    %c0_i32 = arith.constant 0 : i32
    %c0_i32_0 = arith.constant 0 : i32
    %c0_i32_1 = arith.constant 0 : i32
    return %c0_i32, %c0_i32_0 : i32, i32
  }
  func.func @transform_8(%arg0: i32) -> (i32, i32) {
    %c0_i32 = arith.constant 0 : i32
    %c0_i32_0 = arith.constant 0 : i32
    %c0_i32_1 = arith.constant 0 : i32
    return %c0_i32, %c0_i32_0 : i32, i32
  }
  func.func @transform_9(%arg0: i32) -> (i32, i32) {
    %c0_i32 = arith.constant 0 : i32
    %c0_i32_0 = arith.constant 0 : i32
    return %c0_i32, %arg0 : i32, i32
  }
}

</mosaic_0001>

<llo_original>
// kernel: tpu_custom_call.1
$region0: #{tpu_custom_call.1}
  #allocation0 [shape = 'u32[]', space=smem, size = 0x4, offset = 0x4, fixed_abs, tag = 'smem constant byte address 0x4 - core index']
  #allocation1 [shape = 'u32[72,128]{1,0:T(1,128)}', space=vmem, size = 0x9000, scoped, tag = 'internal scratch']
  #allocation2 [shape = 'f32[1,1]{1,0:T(1,128)S(1)}', space=vmem, size = 0x200, scoped, tag = 'scoped memory for tpu_custom_call.1']
  %s0 = inlined_call_operand.vmem [shape: f32[8,32], index: 0, kind: input, shape index: {}]
  %s1 = inlined_call_operand.vmem [shape: f32[64,32], index: 1, kind: input, shape index: {}]
  %s2 = inlined_call_operand.vmem [shape: f32[64,1], index: 2, kind: input, shape index: {}]
  %s3 = inlined_call_operand.vmem [shape: f32[32,64], index: 3, kind: input, shape index: {}]
  %s4 = inlined_call_operand.vmem [shape: f32[32,1], index: 4, kind: input, shape index: {}]
  %s5 = inlined_call_operand.vmem [shape: f32[16,32], index: 5, kind: input, shape index: {}]
  %s6 = inlined_call_operand.vmem [shape: f32[16,1], index: 6, kind: input, shape index: {}]
  %s7 = inlined_call_operand.vmem [shape: f32[16,1], index: 7, kind: input, shape index: {}]
  %s8 = inlined_call_operand.<no memory space> [shape: f32[1,1], index: 8, kind: input, shape index: {}]
  %s9 = inlined_call_operand.hbm [shape: f32[1,8], index: 9, kind: output, shape index: {}]
  %s10 = sld [smem:[#allocation0]]
  $region46: #{tpu_custom_call.1} parent=0
    _
  %s12 = ssub.s32 1, %s10
  %s13 = scalar_select 0, %s12, %s10
  %v14 = vstv %s8
  %15 = vst [vmem:[#allocation2] sm:$0x1] %v14
  $region1: #{tpu_custom_call.1} parent=0
    #allocation3 [shape = 'u8[512]{0}', space=vmem, size = 0x400, scoped, tag = 'output window, operand 0, single buffered']
    #allocation4 [shape = 's32[1]{0}', space=sflag, size = 0x4, scoped, tag = 'scoped memory for tpu_custom_call.1']
    %16 = vsyncpa [#allocation4], 0
    // Predicated region
    $region2: #{tpu_custom_call.1} parent=1 // pred_check
      _
    $region3: #{tpu_custom_call.1} parent=1 // pred_check_branch
      %18 = sbr.rel (0) target = $region5
    $region4: #{tpu_custom_call.1} parent=1 // pred_region
      _
    $region5: #{tpu_custom_call.1} parent=1 // pred_fallthru
      _
    // Predicated region
    $region6: #{tpu_custom_call.1} parent=1 // pred_check
      _
    $region7: #{tpu_custom_call.1} parent=1 // pred_check_branch
      %20 = sbr.rel (0) target = $region9
    $region8: #{tpu_custom_call.1} parent=1 // pred_region
      _
    $region9: #{tpu_custom_call.1} parent=1 // pred_fallthru
      _
    // Predicated region
    $region10: #{tpu_custom_call.1} parent=1 // pred_check
      _
    $region11: #{tpu_custom_call.1} parent=1 // pred_check_branch
      %22 = sbr.rel (0) target = $region13
    $region12: #{tpu_custom_call.1} parent=1 // pred_region
      _
    $region13: #{tpu_custom_call.1} parent=1 // pred_fallthru
      _
    // Predicated region
    $region14: #{tpu_custom_call.1} parent=1 // pred_check
      _
    $region15: #{tpu_custom_call.1} parent=1 // pred_check_branch
      %24 = sbr.rel (0) target = $region17
    $region16: #{tpu_custom_call.1} parent=1 // pred_region
      _
    $region17: #{tpu_custom_call.1} parent=1 // pred_fallthru
      _
    // Predicated region
    $region18: #{tpu_custom_call.1} parent=1 // pred_check
      _
    $region19: #{tpu_custom_call.1} parent=1 // pred_check_branch
      %26 = sbr.rel (0) target = $region21
    $region20: #{tpu_custom_call.1} parent=1 // pred_region
      _
    $region21: #{tpu_custom_call.1} parent=1 // pred_fallthru
      _
    // Predicated region
    $region22: #{tpu_custom_call.1} parent=1 // pred_check
      _
    $region23: #{tpu_custom_call.1} parent=1 // pred_check_branch
      %28 = sbr.rel (0) target = $region25
    $region24: #{tpu_custom_call.1} parent=1 // pred_region
      _
    $region25: #{tpu_custom_call.1} parent=1 // pred_fallthru
      _
    // Predicated region
    $region26: #{tpu_custom_call.1} parent=1 // pred_check
      _
    $region27: #{tpu_custom_call.1} parent=1 // pred_check_branch
      %30 = sbr.rel (0) target = $region29
    $region28: #{tpu_custom_call.1} parent=1 // pred_region
      _
    $region29: #{tpu_custom_call.1} parent=1 // pred_fallthru
      _
    // Predicated region
    $region30: #{tpu_custom_call.1} parent=1 // pred_check
      _
    $region31: #{tpu_custom_call.1} parent=1 // pred_check_branch
      %32 = sbr.rel (0) target = $region33
    $region32: #{tpu_custom_call.1} parent=1 // pred_region
      _
    $region33: #{tpu_custom_call.1} parent=1 // pred_fallthru
      _
    // Predicated region
    $region34: #{tpu_custom_call.1} parent=1 // pred_check
      _
    $region35: #{tpu_custom_call.1} parent=1 // pred_check_branch
      %34 = sbr.rel (0) target = $region37
    $region36: #{tpu_custom_call.1} parent=1 // pred_region
      _
    $region37: #{tpu_custom_call.1} parent=1 // pred_fallthru
      _
    %v35 = vld [vmem:[%s1] sm:$0xff]
    %v36 = vld [vmem:[%s1 + $0x8] sm:$0xff]
    %v37 = vld [vmem:[%s1 + $0x10] sm:$0xff]
    %v38 = vld [vmem:[%s1 + $0x18] sm:$0xff]
    %v39 = vld [vmem:[%s1 + $0x20] sm:$0xff]
    %v40 = vld [vmem:[%s1 + $0x28] sm:$0xff]
    %v41 = vld [vmem:[%s1 + $0x30] sm:$0xff]
    %v42 = vld [vmem:[%s1 + $0x38] sm:$0xff]
    %v43 = vld [vmem:[%s3] sm:$0xff]
    %v44 = vld [vmem:[%s3 + $0x8] sm:$0xff]
    %v45 = vld [vmem:[%s3 + $0x10] sm:$0xff]
    %v46 = vld [vmem:[%s3 + $0x18] sm:$0xff]
    %v47 = vld [vmem:[%s5] sm:$0xff]
    %v48 = vld [vmem:[%s5 + $0x8] sm:$0xff]
    %v49 = vld [vmem:[%s2] sm:$0xff]
    %v50 = vld [vmem:[%s2 + $0x8] sm:$0xff]
    %v51 = vld [vmem:[%s2 + $0x10] sm:$0xff]
    %v52 = vld [vmem:[%s2 + $0x18] sm:$0xff]
    %v53 = vld [vmem:[%s2 + $0x20] sm:$0xff]
    %v54 = vld [vmem:[%s2 + $0x28] sm:$0xff]
    %v55 = vld [vmem:[%s2 + $0x30] sm:$0xff]
    %v56 = vld [vmem:[%s2 + $0x38] sm:$0xff]
    %v57 = vld [vmem:[%s4] sm:$0xff]
    %v58 = vld [vmem:[%s4 + $0x8] sm:$0xff]
    %v59 = vld [vmem:[%s4 + $0x10] sm:$0xff]
    %v60 = vld [vmem:[%s4 + $0x18] sm:$0xff]
    %v61 = vld [vmem:[%s6] sm:$0xff]
    %v62 = vld [vmem:[%s6 + $0x8] sm:$0xff]
    %v63 = vld [vmem:[%s7] sm:$0xff]
    %v64 = vld [vmem:[%s7 + $0x8] sm:$0xff]
    %v65 = vld [vmem:[#allocation2] sm:$0x1]
    %v66 = vld [vmem:[%s0] sm:$0xff]
    %v67 = vld [vmem:[%s0 + $0x8] sm:$0xff]
    %v68 = vld [vmem:[%s0 + $0x10] sm:$0xff]
    %v69 = vld [vmem:[%s0 + $0x18] sm:$0xff]
    %v70 = vld [vmem:[%s0 + $0x20] sm:$0xff]
    %v71 = vld [vmem:[%s0 + $0x28] sm:$0xff]
    %v72 = vld [vmem:[%s0 + $0x30] sm:$0xff]
    %v73 = vld [vmem:[%s0 + $0x38] sm:$0xff]
    %v74 = vld [vmem:[%s0 + $0x40] sm:$0xff]
    %v75 = vld [vmem:[%s0 + $0x48] sm:$0xff]
    %v76 = vld [vmem:[%s0 + $0x50] sm:$0xff]
    %v77 = vld [vmem:[%s0 + $0x58] sm:$0xff]
    %v78 = vld [vmem:[%s0 + $0x60] sm:$0xff]
    %v79 = vld [vmem:[%s0 + $0x68] sm:$0xff]
    %v80 = vld [vmem:[%s0 + $0x70] sm:$0xff]
    %v81 = vld [vmem:[%s0 + $0x78] sm:$0xff]
    %83 = vset.pattern.permute.xlu0 0
    %84 = vperm.xlu0 %83, %v49
    %v85 = vpop.permute.xlu0 %84
    %88 = vset.pattern.permute.xlu0 0
    %89 = vperm.xlu0 %88, %v50
    %v90 = vpop.permute.xlu0 %89
    %93 = vset.pattern.permute.xlu0 0
    %94 = vperm.xlu0 %93, %v51
    %v95 = vpop.permute.xlu0 %94
    %98 = vset.pattern.permute.xlu0 0
    %99 = vperm.xlu0 %98, %v52
    %v100 = vpop.permute.xlu0 %99
    %103 = vset.pattern.permute.xlu0 0
    %104 = vperm.xlu0 %103, %v53
    %v105 = vpop.permute.xlu0 %104
    %108 = vset.pattern.permute.xlu0 0
    %109 = vperm.xlu0 %108, %v54
    %v110 = vpop.permute.xlu0 %109
    %113 = vset.pattern.permute.xlu0 0
    %114 = vperm.xlu0 %113, %v55
    %v115 = vpop.permute.xlu0 %114
    %118 = vset.pattern.permute.xlu0 0
    %119 = vperm.xlu0 %118, %v56
    %v120 = vpop.permute.xlu0 %119
    %vm122 = vcmask 261120
    %v124 = vsel %vm122, %v35, 0
    %v127 = vsel %vm122, %v36, 0
    %v130 = vsel %vm122, %v37, 0
    %v133 = vsel %vm122, %v38, 0
    %v136 = vsel %vm122, %v39, 0
    %v139 = vsel %vm122, %v40, 0
    %v142 = vsel %vm122, %v41, 0
    %v145 = vsel %vm122, %v42, 0
    %v148 = vsel %vm122, %v66, 0
    %v151 = vsel %vm122, %v67, 0
    %v154 = vsel %vm122, %v68, 0
    %v157 = vsel %vm122, %v69, 0
    %v160 = vsel %vm122, %v70, 0
    %v163 = vsel %vm122, %v71, 0
    %v166 = vsel %vm122, %v72, 0
    %v169 = vsel %vm122, %v73, 0
    %v172 = vsel %vm122, %v74, 0
    %v175 = vsel %vm122, %v75, 0
    %v178 = vsel %vm122, %v76, 0
    %v181 = vsel %vm122, %v77, 0
    %v184 = vsel %vm122, %v78, 0
    %v187 = vsel %vm122, %v79, 0
    %v190 = vsel %vm122, %v80, 0
    %v193 = vsel %vm122, %v81, 0
    %195 = vmatpush.xpose.msra.mxu0 %v193
    %196 = vmatpush.xpose.msra.mxu0 %v190
    %197 = vmatpush.xpose.msra.mxu0 %v187
    %198 = vmatpush.xpose.msra.mxu0 %v184
    %199 = vmatpush.xpose.msra.mxu0 %v181
    %200 = vmatpush.xpose.msra.mxu0 %v178
    %201 = vmatpush.xpose.msra.mxu0 %v175
    %202 = vmatpush.xpose.msra.mxu0 %v172
    %203 = vmatpush.xpose.msra.mxu0 %v169
    %204 = vmatpush.xpose.msra.mxu0 %v166
    %205 = vmatpush.xpose.msra.mxu0 %v163
    %206 = vmatpush.xpose.msra.mxu0 %v160
    %207 = vmatpush.xpose.msra.mxu0 %v157
    %208 = vmatpush.xpose.msra.mxu0 %v154
    %209 = vmatpush.xpose.msra.mxu0 %v151
    %210 = vmatpush.xpose.msra.mxu0 %v148
    %211 = vmatmul.f32.gmra.mxu0 %v124
    %v212 = vpop.f32.mrf.mxu0
    %v213 = vadd.f32 %v85, %v212
    %214 = vmatmul.f32.gmra.mxu0 %v127
    %v215 = vpop.f32.mrf.mxu0
    %v216 = vadd.f32 %v90, %v215
    %217 = vmatmul.f32.gmra.mxu0 %v130
    %v218 = vpop.f32.mrf.mxu0
    %v219 = vadd.f32 %v95, %v218
    %220 = vmatmul.f32.gmra.mxu0 %v133
    %v221 = vpop.f32.mrf.mxu0
    %v222 = vadd.f32 %v100, %v221
    %223 = vmatmul.f32.gmra.mxu0 %v136
    %v224 = vpop.f32.mrf.mxu0
    %v225 = vadd.f32 %v105, %v224
    %226 = vmatmul.f32.gmra.mxu0 %v139
    %v227 = vpop.f32.mrf.mxu0
    %v228 = vadd.f32 %v110, %v227
    %229 = vmatmul.f32.gmra.mxu0 %v142
    %v230 = vpop.f32.mrf.mxu0
    %v231 = vadd.f32 %v115, %v230
    %232 = vmatmul.f32.gmra.mxu0 %v145
    %v233 = vpop.f32.mrf.mxu0
    %v234 = vadd.f32 %v120, %v233
    %235 = vdwg.mxu0
    %v236 = vmax.f32 %v213, 0.0
    %v237 = vmax.f32 %v216, 0.0
    %v238 = vmax.f32 %v219, 0.0
    %v239 = vmax.f32 %v222, 0.0
    %v240 = vmax.f32 %v225, 0.0
    %v241 = vmax.f32 %v228, 0.0
    %v242 = vmax.f32 %v231, 0.0
    %v243 = vmax.f32 %v234, 0.0
    %245 = vset.pattern.permute.xlu0 0
    %246 = vperm.xlu0 %245, %v57
    %v247 = vpop.permute.xlu0 %246
    %250 = vset.pattern.permute.xlu0 0
    %251 = vperm.xlu0 %250, %v58
    %v252 = vpop.permute.xlu0 %251
    %255 = vset.pattern.permute.xlu0 0
    %256 = vperm.xlu0 %255, %v59
    %v257 = vpop.permute.xlu0 %256
    %260 = vset.pattern.permute.xlu0 0
    %261 = vperm.xlu0 %260, %v60
    %v262 = vpop.permute.xlu0 %261
    %vm264 = vcmask 523264
    %v266 = vsel %vm264, %v43, 0
    %v269 = vsel %vm264, %v44, 0
    %v272 = vsel %vm264, %v45, 0
    %v275 = vsel %vm264, %v46, 0
    %277 = vmatpush.msra.mxu0 0.0
    %278 = vmatpush.msra.mxu0 0.0
    %279 = vmatpush.msra.mxu0 0.0
    %280 = vmatpush.msra.mxu0 0.0
    %281 = vmatpush.msra.mxu0 0.0
    %282 = vmatpush.msra.mxu0 0.0
    %283 = vmatpush.msra.mxu0 0.0
    %284 = vmatpush.msra.mxu0 0.0
    %285 = vmatpush.msra.mxu0 %v243
    %286 = vmatpush.msra.mxu0 %v242
    %287 = vmatpush.msra.mxu0 %v241
    %288 = vmatpush.msra.mxu0 %v240
    %289 = vmatpush.msra.mxu0 %v239
    %290 = vmatpush.msra.mxu0 %v238
    %291 = vmatpush.msra.mxu0 %v237
    %292 = vmatpush.msra.mxu0 %v236
    %293 = vmatmul.f32.gmra.mxu0 %v266
    %v294 = vpop.f32.mrf.mxu0
    %v295 = vadd.f32 %v247, %v294
    %296 = vmatmul.f32.gmra.mxu0 %v269
    %v297 = vpop.f32.mrf.mxu0
    %v298 = vadd.f32 %v252, %v297
    %299 = vmatmul.f32.gmra.mxu0 %v272
    %v300 = vpop.f32.mrf.mxu0
    %v301 = vadd.f32 %v257, %v300
    %302 = vmatmul.f32.gmra.mxu0 %v275
    %v303 = vpop.f32.mrf.mxu0
    %v304 = vadd.f32 %v262, %v303
    %305 = vdwg.mxu0
    %v306 = vmax.f32 %v295, 0.0
    %v307 = vmax.f32 %v298, 0.0
    %v308 = vmax.f32 %v301, 0.0
    %v309 = vmax.f32 %v304, 0.0
    %311 = vset.pattern.permute.xlu0 0
    %312 = vperm.xlu0 %311, %v61
    %v313 = vpop.permute.xlu0 %312
    %316 = vset.pattern.permute.xlu0 0
    %317 = vperm.xlu0 %316, %v62
    %v318 = vpop.permute.xlu0 %317
    %v321 = vsel %vm122, %v47, 0
    %v324 = vsel %vm122, %v48, 0
    %326 = vmatpush.msra.mxu0 0.0
    %327 = vmatpush.msra.mxu0 0.0
    %328 = vmatpush.msra.mxu0 0.0
    %329 = vmatpush.msra.mxu0 0.0
    %330 = vmatpush.msra.mxu0 0.0
    %331 = vmatpush.msra.mxu0 0.0
    %332 = vmatpush.msra.mxu0 0.0
    %333 = vmatpush.msra.mxu0 0.0
    %334 = vmatpush.msra.mxu0 0.0
    %335 = vmatpush.msra.mxu0 0.0
    %336 = vmatpush.msra.mxu0 0.0
    %337 = vmatpush.msra.mxu0 0.0
    %338 = vmatpush.msra.mxu0 %v309
    %339 = vmatpush.msra.mxu0 %v308
    %340 = vmatpush.msra.mxu0 %v307
    %341 = vmatpush.msra.mxu0 %v306
    %342 = vmatmul.f32.gmra.mxu0 %v321
    %v343 = vpop.f32.mrf.mxu0
    %v344 = vadd.f32 %v313, %v343
    %345 = vmatmul.f32.gmra.mxu0 %v324
    %v346 = vpop.f32.mrf.mxu0
    %v347 = vadd.f32 %v318, %v346
    %348 = vdwg.mxu0
    %v349 = vmax.f32 %v344, 0.0
    %v350 = vmax.f32 %v347, 0.0
    %352 = vset.pattern.permute.xlu0 0
    %353 = vperm.xlu0 %352, %v63
    %v354 = vpop.permute.xlu0 %353
    %357 = vset.pattern.permute.xlu0 0
    %358 = vperm.xlu0 %357, %v64
    %v359 = vpop.permute.xlu0 %358
    %v361 = vmul.f32 %v349, %v354
    %v362 = vmul.f32 %v350, %v359
    %v363 = vadd.f32 %v361, %v362
    %v364 = vrot.slane %v363, 4
    %v365 = vadd.f32 %v363, %v364
    %v366 = vrot.slane %v365, 2
    %v367 = vadd.f32 %v365, %v366
    %v368 = vrot.slane %v367, 1
    %v369 = vadd.f32 %v367, %v368
    %371 = vset.pattern.permute.xlu0 0
    %372 = vperm.xlu0 %371, %v65
    %v373 = vpop.permute.xlu0 %372
    %v375 = vperm.slane %v373, 0
    %v376 = vadd.f32 %v369, %v375
    %377 = vst [vmem:[#allocation3] sm:$0x1] %v376
    // Predicated region
    $region38: #{tpu_custom_call.1} parent=1 // pred_check
      _
    $region39: #{tpu_custom_call.1} parent=1 // pred_check_branch
      %379 = sbr.rel (0) target = $region41
    $region40: #{tpu_custom_call.1} parent=1 // pred_region
      %381 = vsyncadd [#allocation4], 0
      %s383 = sshll.u32 [#allocation3], 4
      %s384 = int_to_ptr.vmem [resolvable:$true] %s383
      %s385 = sshll.u32 %s9, 4
      %s386 = int_to_ptr.hbm [resolvable:$true] %s385
      %388 = dma.vmem_to_hbm [thread:$0]  %s384, 16, %s386, [#allocation4]
    $region41: #{tpu_custom_call.1} parent=1 // pred_fallthru
      _
    // Predicated region
    $region42: #{tpu_custom_call.1} parent=1 // pred_check
      _
    $region43: #{tpu_custom_call.1} parent=1 // pred_check_branch
      %390 = sbr.rel (0) target = $region45
    $region44: #{tpu_custom_call.1} parent=1 // pred_region
      %392 = dma.done [#allocation4], 16
    $region45: #{tpu_custom_call.1} parent=1 // pred_fallthru
      _
    %393 = vsyncpa [#allocation4], 1

</llo_original>
